<compile_context>
chip_gen: v7x
topology: tpu7x:2x2x1
jax: 0.10.0
libtpu: 0.0.40
codegen_flags: <defaults>
</compile_context>

<pallas_src>
import math

import jax
import jax.numpy as jnp
from jax import lax
from jax.experimental import pallas as pl
from jax.experimental.pallas import tpu as pltpu


def _make_ddpm_kernel(B, L):
    def kernel(sa_ref, sb_ref, z_ref, eta_ref, out_ref):
        # sa_ref, sb_ref: SMEM [B] f32 — sqrt(a_bar[t]) and sqrt(1 - a_bar[t])
        # z_ref, eta_ref, out_ref: VMEM [1, Lp] f32 (lane-dense padded slab)
        Lp = z_ref.shape[1]

        # Rebuild per-element coefficient rows from the B scalar coefficients
        # with monotone boundary selects (pure VPU, no cross-lane ops).
        lane = lax.broadcasted_iota(jnp.int32, (1, Lp), 1)
        a_row = jnp.full((1, Lp), sa_ref[0], dtype=jnp.float32)
        b_row = jnp.full((1, Lp), sb_ref[0], dtype=jnp.float32)
        for i in range(1, B):
            m = lane >= i * L
            a_row = jnp.where(m, sa_ref[i], a_row)
            b_row = jnp.where(m, sb_ref[i], b_row)
        # Padding lanes (>= B*L) carry the last row's coefficients; the wrapper
        # discards them.

        # One broadcast-free mix, one full-width vector store.
        out_ref[...] = a_row * z_ref[...] + b_row * eta_ref[...]

    return kernel


@jax.jit
def ddpm_forward(z, t, eta, alpha_bars):
    """noisy = sqrt(a_bar[t]) * z + sqrt(1 - a_bar[t]) * eta  (per-batch broadcast)."""
    B, L = z.shape
    N = alpha_bars.shape[0]

    # Wrapper-side gather + sqrt (trivial XLA work on B elements).  Clamp t so
    # an out-of-range timestep can never index out of bounds.
    t_clamped = jnp.clip(t.astype(jnp.int32), 0, N - 1)
    a = jnp.take(alpha_bars.astype(jnp.float32), t_clamped)
    sa = jnp.sqrt(a)                                   # [B]
    sb = jnp.sqrt(jnp.maximum(1.0 - a, 0.0))           # [B], guarded vs a > 1 ulp

    # Lane-dense packing: flatten (B, L) and zero-pad to a multiple of 128.
    n = B * L
    Lp = pl.cdiv(n, 128) * 128
    zp = jnp.pad(z.astype(jnp.float32).reshape(1, n), ((0, 0), (0, Lp - n)))
    ep = jnp.pad(eta.astype(jnp.float32).reshape(1, n), ((0, 0), (0, Lp - n)))

    out = pl.pallas_call(
        _make_ddpm_kernel(B, L),
        out_shape=jax.ShapeDtypeStruct((1, Lp), jnp.float32),
        in_specs=[
            pl.BlockSpec(memory_space=pltpu.MemorySpace.SMEM),   # sa [B]
            pl.BlockSpec(memory_space=pltpu.MemorySpace.SMEM),   # sb [B]
            pl.BlockSpec(memory_space=pltpu.MemorySpace.VMEM),   # z slab
            pl.BlockSpec(memory_space=pltpu.MemorySpace.VMEM),   # eta slab
        ],
        out_specs=pl.BlockSpec(memory_space=pltpu.MemorySpace.VMEM),
        # z slab is a jit-internal temp -> true in-place alias, one HBM stream
        # fewer on this memory-bound op.
        input_output_aliases={2: 0},
    )(sa, sb, zp, ep)

    return out[0, :n].reshape(B, L)


def cosine_alpha_bars(N, s=0.001):
    # Matches DDPM.get_coefs(type="cosine"): alpha_bar[k] = cos2(k) / cos2(0).
    def cos2(x):
        return jnp.cos((x / N + s) / (1.0 + s) * math.pi / 2.0) ** 2

    k = jnp.arange(N, dtype=jnp.float32)
    return cos2(k) / cos2(jnp.zeros((), dtype=jnp.float32))


if __name__ == "__main__":
    B, L, N = 8, 30, 1000  # ScoreModel operates on length-30 sequences

    key = jax.random.PRNGKey(0)
    kz, ke, kt = jax.random.split(key, 3)
    z = jax.random.normal(kz, (B, L), dtype=jnp.float32)
    # TODO(synk): the PyTorch `eta is None` branch calls torch.randn(z) (a bug);
    # we always supply eta explicitly, matching the training-time call pattern.
    eta = jax.random.normal(ke, (B, L), dtype=jnp.float32)
    t = jax.random.randint(kt, (B,), 0, N, dtype=jnp.int32)

    alpha_bars = cosine_alpha_bars(N)

    out = ddpm_forward(z, t, eta, alpha_bars)
    jax.block_until_ready(out)

    # Pure-JAX reference of the same semantics.
    a = alpha_bars[t][:, None]
    ref = jnp.sqrt(a) * z + jnp.sqrt(1.0 - a) * eta
    assert out.shape == (B, L) and out.dtype == jnp.float32
    assert jnp.allclose(out, ref, atol=1e-5, rtol=1e-5)

    print("KERNEL_OK")
</pallas_src>

<mosaic_0001>
module attributes {stable_mosaic.version = 11 : i64} {
  func.func @kernel(%arg0: memref<8xf32, #tpu.memory_space<smem>>, %arg1: memref<8xf32, #tpu.memory_space<smem>>, %arg2: memref<1x256xf32, #tpu.memory_space<vmem>>, %arg3: memref<1x256xf32, #tpu.memory_space<vmem>>, %arg4: memref<1x256xf32, #tpu.memory_space<vmem>>) attributes {dimension_semantics = [], scalar_prefetch = 0 : i64, scratch_operands = 0 : i64, tpu.core_type = #tpu.core_type<tc>} {
    %0 = tpu.iota {dimensions = array<i32: 1>} : vector<1x256xi32>
    %c0 = arith.constant 0 : index
    %1 = memref.load %arg0[%c0] : memref<8xf32, #tpu.memory_space<smem>>
    %2 = vector.broadcast %1 : f32 to vector<1x256xf32>
    %c0_0 = arith.constant 0 : index
    %3 = memref.load %arg1[%c0_0] : memref<8xf32, #tpu.memory_space<smem>>
    %4 = vector.broadcast %3 : f32 to vector<1x256xf32>
    %c30_i32 = arith.constant 30 : i32
    %5 = vector.broadcast %c30_i32 : i32 to vector<1x256xi32>
    %6 = arith.cmpi sge, %0, %5 : vector<1x256xi32>
    %c1 = arith.constant 1 : index
    %7 = memref.load %arg0[%c1] : memref<8xf32, #tpu.memory_space<smem>>
    %8 = vector.broadcast %7 : f32 to vector<1x256xf32>
    %9 = arith.select %6, %8, %2 : vector<1x256xi1>, vector<1x256xf32>
    %c1_1 = arith.constant 1 : index
    %10 = memref.load %arg1[%c1_1] : memref<8xf32, #tpu.memory_space<smem>>
    %11 = vector.broadcast %10 : f32 to vector<1x256xf32>
    %12 = arith.select %6, %11, %4 : vector<1x256xi1>, vector<1x256xf32>
    %c60_i32 = arith.constant 60 : i32
    %13 = vector.broadcast %c60_i32 : i32 to vector<1x256xi32>
    %14 = arith.cmpi sge, %0, %13 : vector<1x256xi32>
    %c2 = arith.constant 2 : index
    %15 = memref.load %arg0[%c2] : memref<8xf32, #tpu.memory_space<smem>>
    %16 = vector.broadcast %15 : f32 to vector<1x256xf32>
    %17 = arith.select %14, %16, %9 : vector<1x256xi1>, vector<1x256xf32>
    %c2_2 = arith.constant 2 : index
    %18 = memref.load %arg1[%c2_2] : memref<8xf32, #tpu.memory_space<smem>>
    %19 = vector.broadcast %18 : f32 to vector<1x256xf32>
    %20 = arith.select %14, %19, %12 : vector<1x256xi1>, vector<1x256xf32>
    %c90_i32 = arith.constant 90 : i32
    %21 = vector.broadcast %c90_i32 : i32 to vector<1x256xi32>
    %22 = arith.cmpi sge, %0, %21 : vector<1x256xi32>
    %c3 = arith.constant 3 : index
    %23 = memref.load %arg0[%c3] : memref<8xf32, #tpu.memory_space<smem>>
    %24 = vector.broadcast %23 : f32 to vector<1x256xf32>
    %25 = arith.select %22, %24, %17 : vector<1x256xi1>, vector<1x256xf32>
    %c3_3 = arith.constant 3 : index
    %26 = memref.load %arg1[%c3_3] : memref<8xf32, #tpu.memory_space<smem>>
    %27 = vector.broadcast %26 : f32 to vector<1x256xf32>
    %28 = arith.select %22, %27, %20 : vector<1x256xi1>, vector<1x256xf32>
    %c120_i32 = arith.constant 120 : i32
    %29 = vector.broadcast %c120_i32 : i32 to vector<1x256xi32>
    %30 = arith.cmpi sge, %0, %29 : vector<1x256xi32>
    %c4 = arith.constant 4 : index
    %31 = memref.load %arg0[%c4] : memref<8xf32, #tpu.memory_space<smem>>
    %32 = vector.broadcast %31 : f32 to vector<1x256xf32>
    %33 = arith.select %30, %32, %25 : vector<1x256xi1>, vector<1x256xf32>
    %c4_4 = arith.constant 4 : index
    %34 = memref.load %arg1[%c4_4] : memref<8xf32, #tpu.memory_space<smem>>
    %35 = vector.broadcast %34 : f32 to vector<1x256xf32>
    %36 = arith.select %30, %35, %28 : vector<1x256xi1>, vector<1x256xf32>
    %c150_i32 = arith.constant 150 : i32
    %37 = vector.broadcast %c150_i32 : i32 to vector<1x256xi32>
    %38 = arith.cmpi sge, %0, %37 : vector<1x256xi32>
    %c5 = arith.constant 5 : index
    %39 = memref.load %arg0[%c5] : memref<8xf32, #tpu.memory_space<smem>>
    %40 = vector.broadcast %39 : f32 to vector<1x256xf32>
    %41 = arith.select %38, %40, %33 : vector<1x256xi1>, vector<1x256xf32>
    %c5_5 = arith.constant 5 : index
    %42 = memref.load %arg1[%c5_5] : memref<8xf32, #tpu.memory_space<smem>>
    %43 = vector.broadcast %42 : f32 to vector<1x256xf32>
    %44 = arith.select %38, %43, %36 : vector<1x256xi1>, vector<1x256xf32>
    %c180_i32 = arith.constant 180 : i32
    %45 = vector.broadcast %c180_i32 : i32 to vector<1x256xi32>
    %46 = arith.cmpi sge, %0, %45 : vector<1x256xi32>
    %c6 = arith.constant 6 : index
    %47 = memref.load %arg0[%c6] : memref<8xf32, #tpu.memory_space<smem>>
    %48 = vector.broadcast %47 : f32 to vector<1x256xf32>
    %49 = arith.select %46, %48, %41 : vector<1x256xi1>, vector<1x256xf32>
    %c6_6 = arith.constant 6 : index
    %50 = memref.load %arg1[%c6_6] : memref<8xf32, #tpu.memory_space<smem>>
    %51 = vector.broadcast %50 : f32 to vector<1x256xf32>
    %52 = arith.select %46, %51, %44 : vector<1x256xi1>, vector<1x256xf32>
    %c210_i32 = arith.constant 210 : i32
    %53 = vector.broadcast %c210_i32 : i32 to vector<1x256xi32>
    %54 = arith.cmpi sge, %0, %53 : vector<1x256xi32>
    %c7 = arith.constant 7 : index
    %55 = memref.load %arg0[%c7] : memref<8xf32, #tpu.memory_space<smem>>
    %56 = vector.broadcast %55 : f32 to vector<1x256xf32>
    %57 = arith.select %54, %56, %49 : vector<1x256xi1>, vector<1x256xf32>
    %c7_7 = arith.constant 7 : index
    %58 = memref.load %arg1[%c7_7] : memref<8xf32, #tpu.memory_space<smem>>
    %59 = vector.broadcast %58 : f32 to vector<1x256xf32>
    %60 = arith.select %54, %59, %52 : vector<1x256xi1>, vector<1x256xf32>
    %c0_8 = arith.constant 0 : index
    %c0_9 = arith.constant 0 : index
    %61 = vector.load %arg2[%c0_8, %c0_9] : memref<1x256xf32, #tpu.memory_space<vmem>>, vector<1x256xf32>
    %62 = arith.mulf %57, %61 : vector<1x256xf32>
    %c0_10 = arith.constant 0 : index
    %c0_11 = arith.constant 0 : index
    %63 = vector.load %arg3[%c0_10, %c0_11] : memref<1x256xf32, #tpu.memory_space<vmem>>, vector<1x256xf32>
    %64 = arith.mulf %60, %63 : vector<1x256xf32>
    %65 = arith.addf %62, %64 : vector<1x256xf32>
    %c0_12 = arith.constant 0 : index
    %c0_13 = arith.constant 0 : index
    %66 = vector.load %arg4[%c0_12, %c0_13] : memref<1x256xf32, #tpu.memory_space<vmem>>, vector<1x256xf32>
    tpu.vector_store %arg4[%c0_12, %c0_13], %65 {strides = array<i32>} : memref<1x256xf32, #tpu.memory_space<vmem>>, vector<1x256xf32>,
    return
  }
}

</mosaic_0001>

<llo_original>
// kernel: squeeze.1
$region0: #{squeeze.1}
  %s0 = inlined_call_operand.vmem [shape: f32[240], index: 0, kind: input, shape index: {}]
  %s1 = inlined_call_operand.hbm [shape: f32[8,30], index: 1, kind: output, shape index: {}]
  $region1: #{squeeze.1} parent=0
    #allocation0 [shape = 'u8[4096]{0}', space=vmem, size = 0x1000, scoped, tag = 'operand span for operand 1']
    #allocation1 [shape = 's32[1]{0}', space=sflag, size = 0x4, scoped, tag = 'scoped memory for squeeze.1']
    #allocation2 [shape = 'u8[4096]{0}', space=vmem, size = 0x1000, scoped, tag = 'scoped mem for input reshape']
    %2 = vsyncpa [#allocation1], 0
    %s4 = sshllo.u32 0, 2
    %v5 = vld [vmem:[%s0] sm:%s4]
    %6 = vst [vmem:[#allocation2] sm:%s4] %v5
    %v7 = vld [vmem:[#allocation2] sm:$0x1]
    %vm8 = vcmask 244736
    %9 = vst.msk [vmem:[#allocation0] sm:$0x1] %vm8, %v7
    %s10 = scalar_lea.vmem [#allocation2], 1
    %v11 = vld [vmem:[%s10] sm:$0x1]
    %12 = vrot.lane.b32.xlu0 %v11, 106
    %v13 = vpop.permute.xlu0 %12
    %vm14 = vcmask 244736
    %s15 = scalar_lea.vmem [#allocation0], 5
    %16 = vst.msk [vmem:[%s15] sm:$0x1] %vm14, %v13
    %v17 = vld [vmem:[#allocation2] sm:$0x1]
    %18 = vrot.lane.b32.xlu0 %v17, 98
    %v19 = vpop.permute.xlu0 %18
    %vm20 = vcmask 244736
    %s21 = scalar_lea.vmem [#allocation0], 1
    %22 = vst.msk [vmem:[%s21] sm:$0x1] %vm20, %v19
    %s23 = scalar_lea.vmem [#allocation2], 1
    %v24 = vld [vmem:[%s23] sm:$0x1]
    %25 = vrot.lane.b32.xlu0 %v24, 76
    %v26 = vpop.permute.xlu0 %25
    %vm27 = vcmask 244736
    %s28 = scalar_lea.vmem [#allocation0], 6
    %29 = vst.msk [vmem:[%s28] sm:$0x1] %vm27, %v26
    %v30 = vld [vmem:[#allocation2] sm:$0x1]
    %31 = vrot.lane.b32.xlu0 %v30, 68
    %v32 = vpop.permute.xlu0 %31
    %vm33 = vcmask 244736
    %s34 = scalar_lea.vmem [#allocation0], 2
    %35 = vst.msk [vmem:[%s34] sm:$0x1] %vm33, %v32
    %s36 = scalar_lea.vmem [#allocation2], 1
    %v37 = vld [vmem:[%s36] sm:$0x1]
    %38 = vrot.lane.b32.xlu0 %v37, 46
    %v39 = vpop.permute.xlu0 %38
    %vm40 = vcmask 244736
    %s41 = scalar_lea.vmem [#allocation0], 7
    %42 = vst.msk [vmem:[%s41] sm:$0x1] %vm40, %v39
    %v43 = vld [vmem:[#allocation2] sm:$0x1]
    %44 = vrot.lane.b32.xlu0 %v43, 38
    %v45 = vpop.permute.xlu0 %44
    %vm46 = vcmask 244736
    %s47 = scalar_lea.vmem [#allocation0], 3
    %48 = vst.msk [vmem:[%s47] sm:$0x1] %vm46, %v45
    %v49 = vld [vmem:[#allocation2] sm:$0x1]
    %s50 = scalar_lea.vmem [#allocation2], 1
    %v51 = vld [vmem:[%s50] sm:$0x1]
    %vm52 = vcmask 982016
    %v53 = vsel %vm52, %v51, %v49
    %54 = vrot.lane.b32.xlu0 %v53, 8
    %v55 = vpop.permute.xlu0 %54
    %vm56 = vcmask 64512
    %s57 = scalar_lea.vmem [#allocation0], 4
    %58 = vst.msk [vmem:[%s57] sm:$0x1] %vm56, %v55
    %vm59 = vcmask 244800
    %s60 = scalar_lea.vmem [#allocation0], 4
    %61 = vst.msk [vmem:[%s60] sm:$0x1] %vm59, %v55
    %s63 = ssub.s32 128, 128
    %64 = vsyncadd [#allocation1], %s63
    %s66 = sshll.u32 [#allocation0], 4
    %s67 = int_to_ptr.vmem [resolvable:$true] %s66
    %69 = dma.vmem_to_hbm [thread:$0]  %s67, 128, %s1, [#allocation1]
    %70 = dma.done [#allocation1], 128
    %71 = vsyncpa [#allocation1], 1

// kernel: ddpm_forward.1
$region0: #{ddpm_forward.1}
  #allocation0 [shape = 'u32[]', space=smem, size = 0x4, offset = 0x4, fixed_abs, tag = 'smem constant byte address 0x4 - core index']
  #allocation1 [shape = 'u32[144,128]{1,0:T(1,128)}', space=vmem, size = 0x12000, scoped, tag = 'internal scratch']
  %s0 = inlined_call_operand.vmem [shape: f32[8], index: 0, kind: input, shape index: {}]
  %s1 = inlined_call_operand.vmem [shape: f32[8], index: 1, kind: input, shape index: {}]
  %s2 = inlined_call_operand.vmem [shape: f32[1,256], index: 2, kind: input, shape index: {}, may-alias: {2,4}]
  %s3 = inlined_call_operand.vmem [shape: f32[1,256], index: 3, kind: input, shape index: {}]
  %s4 = inlined_call_operand.vmem [shape: f32[1,256], index: 4, kind: output, shape index: {}, may-alias: {2,4}]
  %s5 = sld [smem:[#allocation0]]
  $region34: #{ddpm_forward.1} parent=0
    _
  %s7 = ssub.s32 1, %s5
  %s8 = scalar_select 0, %s7, %s5
  $region1: #{ddpm_forward.1} parent=0
    #allocation2 [shape = 'u8[512]{0}', space=smem, size = 0x200, scoped, tag = 'input window, operand 0, single buffered']
    #allocation3 [shape = 's32[1]{0}', space=sflag, size = 0x4, scoped, tag = 'scoped memory for ddpm_forward.1']
    #allocation4 [shape = 'u8[512]{0}', space=smem, size = 0x200, scoped, tag = 'input window, operand 1, single buffered']
    #allocation5 [shape = 's32[1]{0}', space=sflag, size = 0x4, scoped, tag = 'scoped memory for ddpm_forward.1']
    %9 = vsyncpa [#allocation3], 0
    %10 = vsyncpa [#allocation5], 0
    // Predicated region
    $region2: #{ddpm_forward.1} parent=1 // pred_check
      _
    $region3: #{ddpm_forward.1} parent=1 // pred_check_branch
      %12 = sbr.rel (0) target = $region5
    $region4: #{ddpm_forward.1} parent=1 // pred_region
      %s14 = ssub.s32 16, 16
      %15 = vsyncadd [#allocation3], %s14
      %s17 = sshll.u32 %s0, 4
      %s18 = int_to_ptr.vmem [resolvable:$true] %s17
      %20 = dma.vmem_to_smem %s18, 16, [#allocation2], [#allocation3]
    $region5: #{ddpm_forward.1} parent=1 // pred_fallthru
      _
    // Predicated region
    $region6: #{ddpm_forward.1} parent=1 // pred_check
      _
    $region7: #{ddpm_forward.1} parent=1 // pred_check_branch
      %22 = sbr.rel (0) target = $region9
    $region8: #{ddpm_forward.1} parent=1 // pred_region
      %s24 = ssub.s32 16, 16
      %25 = vsyncadd [#allocation5], %s24
      %s27 = sshll.u32 %s1, 4
      %s28 = int_to_ptr.vmem [resolvable:$true] %s27
      %30 = dma.vmem_to_smem %s28, 16, [#allocation4], [#allocation5]
    $region9: #{ddpm_forward.1} parent=1 // pred_fallthru
      _
    // Predicated region
    $region10: #{ddpm_forward.1} parent=1 // pred_check
      _
    $region11: #{ddpm_forward.1} parent=1 // pred_check_branch
      %32 = sbr.rel (0) target = $region13
    $region12: #{ddpm_forward.1} parent=1 // pred_region
      _
    $region13: #{ddpm_forward.1} parent=1 // pred_fallthru
      _
    // Predicated region
    $region14: #{ddpm_forward.1} parent=1 // pred_check
      _
    $region15: #{ddpm_forward.1} parent=1 // pred_check_branch
      %34 = sbr.rel (0) target = $region17
    $region16: #{ddpm_forward.1} parent=1 // pred_region
      _
    $region17: #{ddpm_forward.1} parent=1 // pred_fallthru
      _
    // Predicated region
    $region18: #{ddpm_forward.1} parent=1 // pred_check
      _
    $region19: #{ddpm_forward.1} parent=1 // pred_check_branch
      %36 = sbr.rel (0) target = $region21
    $region20: #{ddpm_forward.1} parent=1 // pred_region
      %37 = dma.done [#allocation3], 16
    $region21: #{ddpm_forward.1} parent=1 // pred_fallthru
      _
    // Predicated region
    $region22: #{ddpm_forward.1} parent=1 // pred_check
      _
    $region23: #{ddpm_forward.1} parent=1 // pred_check_branch
      %39 = sbr.rel (0) target = $region25
    $region24: #{ddpm_forward.1} parent=1 // pred_region
      %40 = dma.done [#allocation5], 16
    $region25: #{ddpm_forward.1} parent=1 // pred_fallthru
      _
    %41 = sfence
    %v42 = vlaneseq
    %v43 = vand.u32 %v42, 127
    %v44 = vadd.s32 %v43, 128
    %s45 = sld [smem:[#allocation2]]
    %v46 = vstv %s45
    %s47 = sld [smem:[#allocation4]]
    %v48 = vstv %s47
    %vm49 = vcmp.ge.s32.totalorder %v43, 30
    %vm50 = vcmp.ge.s32.totalorder %v44, 30
    %s51 = sld [smem:[#allocation2 + $0x1]]
    %v52 = vstv %s51
    %v53 = vsel %vm49, %v52, %v46
    %v54 = vsel %vm50, %v52, %v46
    %s55 = sld [smem:[#allocation4 + $0x1]]
    %v56 = vstv %s55
    %v57 = vsel %vm49, %v56, %v48
    %v58 = vsel %vm50, %v56, %v48
    %vm59 = vcmp.ge.s32.totalorder %v43, 60
    %vm60 = vcmp.ge.s32.totalorder %v44, 60
    %s61 = sld [smem:[#allocation2 + $0x2]]
    %v62 = vstv %s61
    %v63 = vsel %vm59, %v62, %v53
    %v64 = vsel %vm60, %v62, %v54
    %s65 = sld [smem:[#allocation4 + $0x2]]
    %v66 = vstv %s65
    %v67 = vsel %vm59, %v66, %v57
    %v68 = vsel %vm60, %v66, %v58
    %vm69 = vcmp.ge.s32.totalorder %v43, 90
    %vm70 = vcmp.ge.s32.totalorder %v44, 90
    %s71 = sld [smem:[#allocation2 + $0x3]]
    %v72 = vstv %s71
    %v73 = vsel %vm69, %v72, %v63
    %v74 = vsel %vm70, %v72, %v64
    %s75 = sld [smem:[#allocation4 + $0x3]]
    %v76 = vstv %s75
    %v77 = vsel %vm69, %v76, %v67
    %v78 = vsel %vm70, %v76, %v68
    %vm79 = vcmp.ge.s32.totalorder %v43, 120
    %vm80 = vcmp.ge.s32.totalorder %v44, 120
    %s81 = sld [smem:[#allocation2 + $0x4]]
    %v82 = vstv %s81
    %v83 = vsel %vm79, %v82, %v73
    %v84 = vsel %vm80, %v82, %v74
    %s85 = sld [smem:[#allocation4 + $0x4]]
    %v86 = vstv %s85
    %v87 = vsel %vm79, %v86, %v77
    %v88 = vsel %vm80, %v86, %v78
    %vm89 = vcmp.ge.s32.totalorder %v43, 150
    %vm90 = vcmp.ge.s32.totalorder %v44, 150
    %s91 = sld [smem:[#allocation2 + $0x5]]
    %v92 = vstv %s91
    %v93 = vsel %vm89, %v92, %v83
    %v94 = vsel %vm90, %v92, %v84
    %s95 = sld [smem:[#allocation4 + $0x5]]
    %v96 = vstv %s95
    %v97 = vsel %vm89, %v96, %v87
    %v98 = vsel %vm90, %v96, %v88
    %vm99 = vcmp.ge.s32.totalorder %v43, 180
    %vm100 = vcmp.ge.s32.totalorder %v44, 180
    %s101 = sld [smem:[#allocation2 + $0x6]]
    %v102 = vstv %s101
    %v103 = vsel %vm99, %v102, %v93
    %v104 = vsel %vm100, %v102, %v94
    %s105 = sld [smem:[#allocation4 + $0x6]]
    %v106 = vstv %s105
    %v107 = vsel %vm99, %v106, %v97
    %v108 = vsel %vm100, %v106, %v98
    %vm109 = vcmp.ge.s32.totalorder %v43, 210
    %vm110 = vcmp.ge.s32.totalorder %v44, 210
    %s111 = sld [smem:[#allocation2 + $0x7]]
    %v112 = vstv %s111
    %v113 = vsel %vm109, %v112, %v103
    %v114 = vsel %vm110, %v112, %v104
    %s115 = sld [smem:[#allocation4 + $0x7]]
    %v116 = vstv %s115
    %v117 = vsel %vm109, %v116, %v107
    %v118 = vsel %vm110, %v116, %v108
    %v119 = vld [vmem:[%s2] sm:$0x3]
    %v121 = vlaneseq
    %v122 = vshrl.u32 %v121, 7
    %v123 = vsub.s32 0, %v122
    %v124 = vrot.slane %v119, %v123
    %v125 = vlaneseq
    %v126 = vshrl.u32 %v125, 7
    %v127 = vsub.s32 1, %v126
    %v128 = vrot.slane %v119, %v127
    %v131 = vmul.f32 %v113, %v124
    %v132 = vmul.f32 %v114, %v128
    %v133 = vld [vmem:[%s3] sm:$0x3]
    %v135 = vlaneseq
    %v136 = vshrl.u32 %v135, 7
    %v137 = vsub.s32 0, %v136
    %v138 = vrot.slane %v133, %v137
    %v139 = vlaneseq
    %v140 = vshrl.u32 %v139, 7
    %v141 = vsub.s32 1, %v140
    %v142 = vrot.slane %v133, %v141
    %v145 = vmul.f32 %v117, %v138
    %v146 = vmul.f32 %v118, %v142
    %v147 = vadd.f32 %v131, %v145
    %v148 = vadd.f32 %v132, %v146
    %v151 = vcombine.low %v147, %v148
    %v153 = vunpack.c.l.s4 1966171168
    %v154 = vunpack.c.0.s8 %v153
    %v155 = vlaneseq
    %v156 = vshrl.u32 %v155, 7
    %v157 = vsub.s32 %v154, %v156
    %v158 = vrot.slane %v151, %v157
    %v160 = vunpack.c.l.s4 1966171168
    %v161 = vunpack.c.0.s8 %v160
    %v162 = vlaneseq
    %v163 = vshrl.u32 %v162, 7
    %v164 = vsub.s32 %v161, %v163
    %v165 = vrot.slane %v158, %v164
    %v167 = vlaneseq
    %vm168 = vcmp.ge.s32.totalorder %v167, 0
    %vm169 = vcmp.lt.s32.totalorder %v167, 256
    %vm170 = vmand %vm168, %vm169
    %171 = vst.msk [vmem:[%s4] sm:$0x3] %vm170, %v165
    // Predicated region
    $region26: #{ddpm_forward.1} parent=1 // pred_check
      _
    $region27: #{ddpm_forward.1} parent=1 // pred_check_branch
      %173 = sbr.rel (0) target = $region29
    $region28: #{ddpm_forward.1} parent=1 // pred_region
      _
    $region29: #{ddpm_forward.1} parent=1 // pred_fallthru
      _
    // Predicated region
    $region30: #{ddpm_forward.1} parent=1 // pred_check
      _
    $region31: #{ddpm_forward.1} parent=1 // pred_check_branch
      %175 = sbr.rel (0) target = $region33
    $region32: #{ddpm_forward.1} parent=1 // pred_region
      _
    $region33: #{ddpm_forward.1} parent=1 // pred_fallthru
      _
    %176 = vsyncpa [#allocation3], 1
    %177 = vsyncpa [#allocation5], 1

</llo_original>
